<compile_context>
chip_gen: v7x
topology: tpu7x:2x2x1
jax: 0.10.0
libtpu: 0.0.40
codegen_flags: <defaults>
</compile_context>

<pallas_src>
import math

import jax
import jax.numpy as jnp
from jax.experimental import pallas as pl
from jax.experimental.pallas import tpu as pltpu

LANES = 128
ACC_ROWS = 32         # (32,128) out slab = 4 independent (8,128) f32 accumulators
ROW_ALIGN = 32        # block rows multiple of 32 -> legal for f32/bf16/int8 blocks
MAX_TILE_ROWS = 4096  # (4096,128) f32 = 2 MiB per pipeline buffer


def _round_up(x, m):
    return ((x + m - 1) // m) * m


def _make_bce_sum_kernel(tile_rows, n_valid, needs_mask):
    """Kernel factory: closes over static tiling / masking parameters."""

    def kernel(pred_ref, true_ref, out_ref):
        i = pl.program_id(0)

        @pl.when(i == 0)
        def _():
            out_ref[...] = jnp.zeros_like(out_ref)

        x = pred_ref[...].astype(jnp.float32)  # logits
        y = true_ref[...].astype(jnp.float32)  # targets (f32/bf16/int8 in HBM)

        # Numerically stable BCE-with-logits (PyTorch formulation):
        #   loss = max(x, 0) - x*y + log1p(exp(-|x|))
        per_elem = jnp.maximum(x, 0.0) - x * y + jnp.log1p(jnp.exp(-jnp.abs(x)))

        if needs_mask:
            # Ragged tail handled in-kernel: zero every flat index >= n_valid
            # (covers both the lane-pad elements and the partial last block,
            # whose out-of-bounds rows may contain garbage). The select rides
            # on idle VALU slots; flat index fits int32 for N < 2^31.
            rows = jax.lax.broadcasted_iota(jnp.int32, per_elem.shape, 0) + i * tile_rows
            cols = jax.lax.broadcasted_iota(jnp.int32, per_elem.shape, 1)
            valid = rows * LANES + cols < n_valid
            per_elem = jnp.where(valid, per_elem, 0.0)

        # Fold (tile_rows,128) -> (32,128) with VPU adds only (leading-dim-split
        # reshape is tile-preserving); 4 independent accumulation chains keep
        # ILP.  The expensive cross-lane reduction is deferred to the wrapper.
        # Plain (uncompensated) f32 accumulation — fine for loss sums up to
        # ~1e9 elements.
        out_ref[...] += per_elem.reshape(tile_rows // ACC_ROWS, ACC_ROWS, LANES).sum(axis=0)

    return kernel


def cross_entropy_loss(y_pred, y_true):
    """Binary cross-entropy with logits, mean reduction (PyTorch semantics).

    Args:
        y_pred: logits, shape (B, 1, H, W), float dtype.
        y_true: binary targets, shape (B, 1, H, W), float / bool / int dtype.

    Returns:
        Scalar f32 loss.
    """
    assert y_pred.shape == y_true.shape

    # Keep narrow float dtypes (bf16 etc.) for the logits; cast in-kernel.
    pred = y_pred if jnp.issubdtype(y_pred.dtype, jnp.floating) else y_pred.astype(jnp.float32)
    # Targets: float dtypes pass through; bool / integer masks stream as int8
    # (1 B/elem) and are upcast to f32 inside the kernel.
    if jnp.issubdtype(y_true.dtype, jnp.floating):
        true = y_true
    else:
        true = y_true.astype(jnp.int8)

    n_valid = math.prod(y_pred.shape)
    pred_flat = pred.reshape(-1)
    true_flat = true.reshape(-1)

    # Pad at most to the next multiple of 128 (needed only for the (rows,128)
    # reshape when N % 128 != 0).  Everything else is masked in-kernel.
    lane_pad = (-n_valid) % LANES
    if lane_pad:
        pred_flat = jnp.pad(pred_flat, (0, lane_pad))
        true_flat = jnp.pad(true_flat, (0, lane_pad))
    rows_total = (n_valid + lane_pad) // LANES

    tile_rows = min(MAX_TILE_ROWS, _round_up(rows_total, ROW_ALIGN))
    num_blocks = pl.cdiv(rows_total, tile_rows)
    needs_mask = (lane_pad != 0) or (rows_total % tile_rows != 0)

    pred_2d = pred_flat.reshape(rows_total, LANES)
    true_2d = true_flat.reshape(rows_total, LANES)

    bytes_accessed = (pred_2d.size * pred_2d.dtype.itemsize
                      + true_2d.size * true_2d.dtype.itemsize
                      + ACC_ROWS * LANES * 4)

    partials = pl.pallas_call(
        _make_bce_sum_kernel(tile_rows, n_valid, needs_mask),
        out_shape=jax.ShapeDtypeStruct((ACC_ROWS, LANES), jnp.float32),
        grid_spec=pltpu.PrefetchScalarGridSpec(
            num_scalar_prefetch=0,
            grid=(num_blocks,),
            in_specs=[
                pl.BlockSpec((tile_rows, LANES), lambda i: (i, 0)),
                pl.BlockSpec((tile_rows, LANES), lambda i: (i, 0)),
            ],
            # Same output block for every grid step -> VMEM-resident accumulator.
            out_specs=pl.BlockSpec((ACC_ROWS, LANES), lambda i: (0, 0)),
        ),
        compiler_params=pltpu.CompilerParams(
            dimension_semantics=("arbitrary",),
        ),
        cost_estimate=pl.CostEstimate(
            flops=5 * n_valid,
            transcendentals=2 * n_valid,
            bytes_accessed=bytes_accessed,
        ),
    )(pred_2d, true_2d)

    # Single cross-lane/sublane reduction on the tiny (32,128) slab.
    total = jnp.sum(partials, dtype=jnp.float32)
    return total / jnp.float32(n_valid)


def _reference(y_pred, y_true):
    x = jnp.asarray(y_pred, jnp.float32)
    y = jnp.asarray(y_true, jnp.float32)
    loss = jnp.maximum(x, 0.0) - x * y + jnp.log1p(jnp.exp(-jnp.abs(x)))
    return jnp.mean(loss)


if __name__ == "__main__":
    key = jax.random.PRNGKey(0)
    k1, k2, k3, k4 = jax.random.split(key, 4)

    # (B, 1, H, W) as the module expects.
    B, C, H, W = 2, 1, 16, 16
    y_pred = jax.random.normal(k1, (B, C, H, W), dtype=jnp.float32) * 2.0
    y_true = (jax.random.uniform(k2, (B, C, H, W)) > 0.5).astype(jnp.float32)

    loss = cross_entropy_loss(y_pred, y_true)
    jax.block_until_ready(loss)
    ref = _reference(y_pred, y_true)
    assert jnp.allclose(loss, ref, atol=1e-4, rtol=1e-5), (loss, ref)

    # Unaligned spatial size (exercises in-kernel ragged-tail masking) with an
    # integer target mask streamed as int8 (no wrapper-side f32 upcast).
    y_pred2 = jax.random.normal(k3, (2, 1, 15, 17), dtype=jnp.float32)
    y_true2 = (jax.random.uniform(k4, (2, 1, 15, 17)) > 0.5).astype(jnp.uint8)
    loss2 = cross_entropy_loss(y_pred2, y_true2)
    jax.block_until_ready(loss2)
    ref2 = _reference(y_pred2, y_true2)
    assert jnp.allclose(loss2, ref2, atol=1e-4, rtol=1e-5), (loss2, ref2)

    print("KERNEL_OK")
</pallas_src>

<mosaic_0001>
module attributes {stable_mosaic.version = 11 : i64} {
  func.func @kernel(%arg0: i32, %arg1: memref<32x128xf32, #tpu.memory_space<vmem>>, %arg2: memref<32x128xf32, #tpu.memory_space<vmem>>, %arg3: memref<32x128xf32, #tpu.memory_space<vmem>>) attributes {dimension_semantics = [#tpu.dimension_semantics<arbitrary>], iteration_bounds = array<i64: 1>, scalar_prefetch = 0 : i64, scratch_operands = 0 : i64, tpu.core_type = #tpu.core_type<tc>, window_params = [{transform_indices = @transform_0, window_bounds = array<i64: 32, 128>}, {transform_indices = @transform_1, window_bounds = array<i64: 32, 128>}, {pipeline_mode = #tpu.pipeline_mode<synchronous>, transform_indices = @transform_2, window_bounds = array<i64: 32, 128>}]} {
    %c0_i32 = arith.constant 0 : i32
    %0 = arith.cmpi eq, %arg0, %c0_i32 : i32
    %1 = arith.extui %0 : i1 to i32
    %c0_i32_0 = arith.constant 0 : i32
    %2 = arith.cmpi ne, %1, %c0_i32_0 : i32
    scf.if %2 {
      %cst_11 = arith.constant 0.000000e+00 : f32
      %32 = vector.broadcast %cst_11 : f32 to vector<32x128xf32>
      %c0_12 = arith.constant 0 : index
      %c0_13 = arith.constant 0 : index
      %33 = vector.load %arg3[%c0_12, %c0_13] : memref<32x128xf32, #tpu.memory_space<vmem>>, vector<32x128xf32>
      tpu.vector_store %arg3[%c0_12, %c0_13], %32 {strides = array<i32>} : memref<32x128xf32, #tpu.memory_space<vmem>>, vector<32x128xf32>,
    } else {
    }
    %c0 = arith.constant 0 : index
    %c0_1 = arith.constant 0 : index
    %3 = vector.load %arg1[%c0, %c0_1] : memref<32x128xf32, #tpu.memory_space<vmem>>, vector<32x128xf32>
    %c0_2 = arith.constant 0 : index
    %c0_3 = arith.constant 0 : index
    %4 = vector.load %arg2[%c0_2, %c0_3] : memref<32x128xf32, #tpu.memory_space<vmem>>, vector<32x128xf32>
    %cst = arith.constant 0.000000e+00 : f32
    %5 = vector.broadcast %cst : f32 to vector<32x128xf32>
    %6 = arith.maximumf %3, %5 : vector<32x128xf32>
    %7 = arith.mulf %3, %4 : vector<32x128xf32>
    %8 = arith.subf %6, %7 : vector<32x128xf32>
    %9 = math.absf %3 : vector<32x128xf32>
    %cst_4 = arith.constant 0.000000e+00 : f32
    %10 = vector.broadcast %cst_4 : f32 to vector<32x128xf32>
    %11 = arith.subf %10, %9 : vector<32x128xf32>
    %12 = math.exp %11 : vector<32x128xf32>
    %13 = math.log1p %12 : vector<32x128xf32>
    %14 = arith.addf %8, %13 : vector<32x128xf32>
    %15 = tpu.iota {dimensions = array<i32: 0>} : vector<32x128xi32>
    %c32_i32 = arith.constant 32 : i32
    %16 = arith.muli %arg0, %c32_i32 : i32
    %17 = vector.broadcast %16 : i32 to vector<32x128xi32>
    %18 = arith.addi %15, %17 : vector<32x128xi32>
    %19 = tpu.iota {dimensions = array<i32: 1>} : vector<32x128xi32>
    %c128_i32 = arith.constant 128 : i32
    %20 = vector.broadcast %c128_i32 : i32 to vector<32x128xi32>
    %21 = arith.muli %18, %20 : vector<32x128xi32>
    %22 = arith.addi %21, %19 : vector<32x128xi32>
    %c512_i32 = arith.constant 512 : i32
    %23 = vector.broadcast %c512_i32 : i32 to vector<32x128xi32>
    %24 = arith.cmpi slt, %22, %23 : vector<32x128xi32>
    %cst_5 = arith.constant 0.000000e+00 : f32
    %25 = vector.broadcast %cst_5 : f32 to vector<32x128xf32>
    %26 = arith.select %24, %14, %25 : vector<32x128xi1>, vector<32x128xf32>
    %c0_6 = arith.constant 0 : index
    %c0_7 = arith.constant 0 : index
    %27 = vector.load %arg3[%c0_6, %c0_7] : memref<32x128xf32, #tpu.memory_space<vmem>>, vector<32x128xf32>
    %28 = vector.shape_cast %26 : vector<32x128xf32> to vector<1x32x128xf32>
    %cst_8 = arith.constant dense<0.000000e+00> : vector<32x128xf32>
    %29 = vector.multi_reduction <add>, %28, %cst_8 [0] : vector<1x32x128xf32> to vector<32x128xf32>
    %30 = arith.addf %27, %29 : vector<32x128xf32>
    %c0_9 = arith.constant 0 : index
    %c0_10 = arith.constant 0 : index
    %31 = vector.load %arg3[%c0_9, %c0_10] : memref<32x128xf32, #tpu.memory_space<vmem>>, vector<32x128xf32>
    tpu.vector_store %arg3[%c0_9, %c0_10], %30 {strides = array<i32>} : memref<32x128xf32, #tpu.memory_space<vmem>>, vector<32x128xf32>,
    return
  }
  func.func @transform_0(%arg0: i32) -> (i32, i32) {
    %c0_i32 = arith.constant 0 : i32
    %c0_i32_0 = arith.constant 0 : i32
    return %arg0, %c0_i32 : i32, i32
  }
  func.func @transform_1(%arg0: i32) -> (i32, i32) {
    %c0_i32 = arith.constant 0 : i32
    %c0_i32_0 = arith.constant 0 : i32
    return %arg0, %c0_i32 : i32, i32
  }
  func.func @transform_2(%arg0: i32) -> (i32, i32) {
    %c0_i32 = arith.constant 0 : i32
    %c0_i32_0 = arith.constant 0 : i32
    %c0_i32_1 = arith.constant 0 : i32
    return %c0_i32, %c0_i32_0 : i32, i32
  }
}

</mosaic_0001>

<llo_original>
// kernel: tpu_custom_call.1
$region0: #{tpu_custom_call.1}
  #allocation0 [shape = 'u32[]', space=smem, size = 0x4, offset = 0x4, fixed_abs, tag = 'smem constant byte address 0x4 - core index']
  #allocation1 [shape = 'u32[144,128]{1,0:T(1,128)}', space=vmem, size = 0x12000, scoped, tag = 'internal scratch']
  %s0 = inlined_call_operand.hbm [shape: f32[4,128], index: 0, kind: input, shape index: {}]
  %s1 = inlined_call_operand.hbm [shape: f32[4,128], index: 1, kind: input, shape index: {}]
  %s2 = inlined_call_operand.hbm [shape: f32[32,128], index: 2, kind: output, shape index: {}]
  %s3 = sld [smem:[#allocation0]]
  $region30: #{tpu_custom_call.1} parent=0
    _
  %s5 = ssub.s32 1, %s3
  %s6 = scalar_select 0, %s5, %s3
  $region1: #{tpu_custom_call.1} parent=0
    #allocation2 [shape = 'u8[16384]{0}', space=vmem, size = 0x4000, scoped, tag = 'input window, operand 0, single buffered']
    #allocation3 [shape = 's32[1]{0}', space=sflag, size = 0x4, scoped, tag = 'scoped memory for tpu_custom_call.1']
    #allocation4 [shape = 's32[1]{0}', space=sflag, size = 0x4, scoped, tag = 'scoped memory for tpu_custom_call.1']
    #allocation5 [shape = 'u8[16384]{0}', space=vmem, size = 0x4000, scoped, tag = 'input window, operand 1, single buffered']
    #allocation6 [shape = 's32[1]{0}', space=sflag, size = 0x4, scoped, tag = 'scoped memory for tpu_custom_call.1']
    #allocation7 [shape = 'u8[16384]{0}', space=vmem, size = 0x4000, scoped, tag = 'output window, operand 0, single buffered']
    %7 = vsyncpa [#allocation3], 0
    %8 = vsyncpa [#allocation6], 0
    %9 = vsyncpa [#allocation4], 0
    // Predicated region
    $region2: #{tpu_custom_call.1} parent=1 // pred_check
      _
    $region3: #{tpu_custom_call.1} parent=1 // pred_check_branch
      %11 = sbr.rel (0) target = $region5
    $region4: #{tpu_custom_call.1} parent=1 // pred_region
      %s13 = ssub.s32 512, 64
      %14 = vsyncadd [#allocation3], %s13
      %s15 = sshll.u32 [#allocation2], 4
      %s16 = int_to_ptr.vmem [resolvable:$true] %s15
      %21 = dma.hbm_to_vmem [thread:$0]  %s0, 64, %s16, [#allocation3], 64, 64, 4
    $region5: #{tpu_custom_call.1} parent=1 // pred_fallthru
      _
    // Predicated region
    $region6: #{tpu_custom_call.1} parent=1 // pred_check
      _
    $region7: #{tpu_custom_call.1} parent=1 // pred_check_branch
      %23 = sbr.rel (0) target = $region9
    $region8: #{tpu_custom_call.1} parent=1 // pred_region
      %s25 = ssub.s32 512, 64
      %26 = vsyncadd [#allocation6], %s25
      %s27 = sshll.u32 [#allocation5], 4
      %s28 = int_to_ptr.vmem [resolvable:$true] %s27
      %33 = dma.hbm_to_vmem [thread:$0]  %s1, 64, %s28, [#allocation6], 64, 64, 4
    $region9: #{tpu_custom_call.1} parent=1 // pred_fallthru
      _
    // Predicated region
    $region10: #{tpu_custom_call.1} parent=1 // pred_check
      _
    $region11: #{tpu_custom_call.1} parent=1 // pred_check_branch
      %35 = sbr.rel (0) target = $region13
    $region12: #{tpu_custom_call.1} parent=1 // pred_region
      %36 = dma.done [#allocation3], 512
    $region13: #{tpu_custom_call.1} parent=1 // pred_fallthru
      _
    // Predicated region
    $region14: #{tpu_custom_call.1} parent=1 // pred_check
      _
    $region15: #{tpu_custom_call.1} parent=1 // pred_check_branch
      %38 = sbr.rel (0) target = $region17
    $region16: #{tpu_custom_call.1} parent=1 // pred_region
      %39 = dma.done [#allocation6], 512
    $region17: #{tpu_custom_call.1} parent=1 // pred_fallthru
      _
    %p40 = scmp.eq.s32.totalorder 0, 0
    // Predicated region
    $region18: #{tpu_custom_call.1} parent=1 // pred_check
      %p41 = pneg %p40
    $region19: #{tpu_custom_call.1} parent=1 // pred_check_branch
      %43 = sbr.rel (%p41) target = $region21
    $region20: #{tpu_custom_call.1} parent=1 // pred_region
      %44 = vst [vmem:[#allocation7] sm:$0xff] 0.0
      %45 = vst [vmem:[#allocation7 + $0x8] sm:$0xff] 0.0
      %46 = vst [vmem:[#allocation7 + $0x10] sm:$0xff] 0.0
      %47 = vst [vmem:[#allocation7 + $0x18] sm:$0xff] 0.0
    $region21: #{tpu_custom_call.1} parent=1 // pred_fallthru
      _
    %v48 = vld [vmem:[#allocation2] sm:$0xff]
    %v49 = vld [vmem:[#allocation2 + $0x8] sm:$0xff]
    %v50 = vld [vmem:[#allocation2 + $0x10] sm:$0xff]
    %v51 = vld [vmem:[#allocation2 + $0x18] sm:$0xff]
    %v52 = vld [vmem:[#allocation5] sm:$0xff]
    %v53 = vld [vmem:[#allocation5 + $0x8] sm:$0xff]
    %v54 = vld [vmem:[#allocation5 + $0x10] sm:$0xff]
    %v55 = vld [vmem:[#allocation5 + $0x18] sm:$0xff]
    %v56 = vmax.f32 %v48, 0.0
    %v57 = vmax.f32 %v49, 0.0
    %v58 = vmax.f32 %v50, 0.0
    %v59 = vmax.f32 %v51, 0.0
    %v60 = vmul.f32 %v48, %v52
    %v61 = vmul.f32 %v49, %v53
    %v62 = vmul.f32 %v50, %v54
    %v63 = vmul.f32 %v51, %v55
    %v64 = vsub.f32 %v56, %v60
    %v65 = vsub.f32 %v57, %v61
    %v66 = vsub.f32 %v58, %v62
    %v67 = vsub.f32 %v59, %v63
    %v68 = vand.u32 2147483647, %v48
    %v69 = vand.u32 2147483647, %v49
    %v70 = vand.u32 2147483647, %v50
    %v71 = vand.u32 2147483647, %v51
    %v72 = vsub.f32 0.0, %v68
    %v73 = vsub.f32 0.0, %v69
    %v74 = vsub.f32 0.0, %v70
    %v75 = vsub.f32 0.0, %v71
    %v76 = vmul.f32 %v72, 1.442695
    %v77 = vpow.pop %v76
    %v78 = vmul.f32 %v73, 1.442695
    %v79 = vpow.pop %v78
    %v80 = vmul.f32 %v74, 1.442695
    %v81 = vpow.pop %v80
    %v82 = vmul.f32 %v75, 1.442695
    %v83 = vpow.pop %v82
    %v84 = vadd.f32 %v77, 1.0
    %v85 = vlog2.pop %v84
    %v86 = vmul.f32 %v85, 0.6931472
    %v87 = vmul.f32 -0.5, %v77
    %v88 = vadd.f32 %v87, 1.0
    %v89 = vmul.f32 %v88, %v77
    %v90 = vand.u32 2147483647, %v77
    %vm91 = vcmp.lt.f32.partialorder %v90, 0.0004427343
    %v92 = vsel %vm91, %v89, %v86
    %v93 = vadd.f32 %v79, 1.0
    %v94 = vlog2.pop %v93
    %v95 = vmul.f32 %v94, 0.6931472
    %v96 = vmul.f32 -0.5, %v79
    %v97 = vadd.f32 %v96, 1.0
    %v98 = vmul.f32 %v97, %v79
    %v99 = vand.u32 2147483647, %v79
    %vm100 = vcmp.lt.f32.partialorder %v99, 0.0004427343
    %v101 = vsel %vm100, %v98, %v95
    %v102 = vadd.f32 %v81, 1.0
    %v103 = vlog2.pop %v102
    %v104 = vmul.f32 %v103, 0.6931472
    %v105 = vmul.f32 -0.5, %v81
    %v106 = vadd.f32 %v105, 1.0
    %v107 = vmul.f32 %v106, %v81
    %v108 = vand.u32 2147483647, %v81
    %vm109 = vcmp.lt.f32.partialorder %v108, 0.0004427343
    %v110 = vsel %vm109, %v107, %v104
    %v111 = vadd.f32 %v83, 1.0
    %v112 = vlog2.pop %v111
    %v113 = vmul.f32 %v112, 0.6931472
    %v114 = vmul.f32 -0.5, %v83
    %v115 = vadd.f32 %v114, 1.0
    %v116 = vmul.f32 %v115, %v83
    %v117 = vand.u32 2147483647, %v83
    %vm118 = vcmp.lt.f32.partialorder %v117, 0.0004427343
    %v119 = vsel %vm118, %v116, %v113
    %v120 = vadd.f32 %v64, %v92
    %v121 = vadd.f32 %v65, %v101
    %v122 = vadd.f32 %v66, %v110
    %v123 = vadd.f32 %v67, %v119
    %v124 = vlaneseq
    %v125 = vshrl.u32 %v124, 7
    %v126 = vadd.s32 %v125, 8
    %v127 = vadd.s32 %v125, 16
    %v128 = vadd.s32 %v125, 24
    %s129 = smul.u32 0, 32
    %v130 = vstv %s129
    %v131 = vadd.s32 %v125, %v130
    %v132 = vadd.s32 %v126, %v130
    %v133 = vadd.s32 %v127, %v130
    %v134 = vadd.s32 %v128, %v130
    %v135 = vlaneseq
    %v136 = vand.u32 %v135, 127
    %v137 = vmul.u32 %v131, 128
    %v138 = vmul.u32 %v132, 128
    %v139 = vmul.u32 %v133, 128
    %v140 = vmul.u32 %v134, 128
    %v141 = vadd.s32 %v137, %v136
    %v142 = vadd.s32 %v138, %v136
    %v143 = vadd.s32 %v139, %v136
    %v144 = vadd.s32 %v140, %v136
    %vm145 = vcmp.lt.s32.totalorder %v141, 512
    %vm146 = vcmp.lt.s32.totalorder %v142, 512
    %vm147 = vcmp.lt.s32.totalorder %v143, 512
    %vm148 = vcmp.lt.s32.totalorder %v144, 512
    %v149 = vsel %vm145, %v120, 0.0
    %v150 = vsel %vm146, %v121, 0.0
    %v151 = vsel %vm147, %v122, 0.0
    %v152 = vsel %vm148, %v123, 0.0
    %v153 = vld [vmem:[#allocation7] sm:$0xff]
    %v154 = vld [vmem:[#allocation7 + $0x8] sm:$0xff]
    %v155 = vld [vmem:[#allocation7 + $0x10] sm:$0xff]
    %v156 = vld [vmem:[#allocation7 + $0x18] sm:$0xff]
    %v157 = vadd.f32 %v149, 0.0
    %v158 = vadd.f32 %v150, 0.0
    %v159 = vadd.f32 %v151, 0.0
    %v160 = vadd.f32 %v152, 0.0
    %v161 = vadd.f32 %v153, %v157
    %v162 = vadd.f32 %v154, %v158
    %v163 = vadd.f32 %v155, %v159
    %v164 = vadd.f32 %v156, %v160
    %165 = vst [vmem:[#allocation7] sm:$0xff] %v161
    %166 = vst [vmem:[#allocation7 + $0x8] sm:$0xff] %v162
    %167 = vst [vmem:[#allocation7 + $0x10] sm:$0xff] %v163
    %168 = vst [vmem:[#allocation7 + $0x18] sm:$0xff] %v164
    // Predicated region
    $region22: #{tpu_custom_call.1} parent=1 // pred_check
      _
    $region23: #{tpu_custom_call.1} parent=1 // pred_check_branch
      %170 = sbr.rel (0) target = $region25
    $region24: #{tpu_custom_call.1} parent=1 // pred_region
      %s172 = ssub.s32 512, 512
      %173 = vsyncadd [#allocation4], %s172
      %s174 = sshll.u32 [#allocation7], 4
      %s175 = int_to_ptr.vmem [resolvable:$true] %s174
      %180 = dma.vmem_to_hbm [thread:$0]  %s175, 512, %s2, [#allocation4], 128, 128, 8
    $region25: #{tpu_custom_call.1} parent=1 // pred_fallthru
      _
    // Predicated region
    $region26: #{tpu_custom_call.1} parent=1 // pred_check
      _
    $region27: #{tpu_custom_call.1} parent=1 // pred_check_branch
      %182 = sbr.rel (0) target = $region29
    $region28: #{tpu_custom_call.1} parent=1 // pred_region
      %183 = dma.done [#allocation4], 512
    $region29: #{tpu_custom_call.1} parent=1 // pred_fallthru
      _
    %184 = vsyncpa [#allocation3], 1
    %185 = vsyncpa [#allocation6], 1
    %186 = vsyncpa [#allocation4], 1

</llo_original>
